<compile_context>
chip_gen: v6e
topology: v6e:2x2x1
jax: 0.10.0
libtpu: 0.0.40
codegen_flags: <defaults>
</compile_context>

<pallas_src>
import functools

import jax
import jax.numpy as jnp
from jax.experimental import pallas as pl
from jax.experimental.pallas import tpu as pltpu

F_IN, H, N_OUT = 10, 64, 2   # logical sizes of the torch module
K1 = 16                      # padded fc1 contraction width (10 real + 6 zero lanes)
KH = 128                     # padded hidden width (64 real + 64 zero lanes)
N_PAD = 8                    # padded logits width written to HBM (2 real + 6 zero lanes)


def mlp_kernel(x_ref, w1_ref, b1_ref, w2_ref, b2_ref, w3_ref, b3_ref, o_ref, xs_ref):
    # Build a K-aligned bf16 input tile in VMEM scratch: real features in lanes 0..9,
    # zeros in lanes 10..15 (W1's padded rows are zero too, so this is doubly safe).
    xs_ref[...] = jnp.zeros_like(xs_ref)
    xs_ref[:, :F_IN] = x_ref[...].astype(jnp.bfloat16)

    # fc1 -> dropout(eval: identity) -> relu.  bf16 MXU inputs, f32 accumulation,
    # f32 bias adds (free VPU broadcast).
    h1 = jnp.dot(xs_ref[...], w1_ref[...], preferred_element_type=jnp.float32)  # [TM,128]
    h1 = jnp.maximum(h1 + b1_ref[...], 0.0).astype(jnp.bfloat16)
    # fc2 -> relu.
    h2 = jnp.dot(h1, w2_ref[...], preferred_element_type=jnp.float32)           # [TM,128]
    h2 = jnp.maximum(h2 + b2_ref[...], 0.0).astype(jnp.bfloat16)
    # fc3 -> narrow logits block (only 8 lanes go back to HBM).
    out = jnp.dot(h2, w3_ref[...], preferred_element_type=jnp.float32) + b3_ref[...]
    o_ref[...] = out.astype(o_ref.dtype)                                         # [TM,8]


def prepare_params(w1, b1, w2, b2, w3, b3):
    """Zero-pad weights to MXU-friendly bf16 slabs; keep biases in f32 (exact adds).

    w* are [in, out] (transposed vs torch's [out, in]); b* are [out]."""
    W1 = jnp.zeros((K1, KH), jnp.float32).at[:F_IN, :H].set(w1).astype(jnp.bfloat16)
    W2 = jnp.zeros((KH, KH), jnp.float32).at[:H, :H].set(w2).astype(jnp.bfloat16)
    W3 = jnp.zeros((KH, N_PAD), jnp.float32).at[:H, :N_OUT].set(w3).astype(jnp.bfloat16)
    B1 = jnp.zeros((1, KH), jnp.float32).at[0, :H].set(b1)
    B2 = jnp.zeros((1, KH), jnp.float32).at[0, :H].set(b2)
    B3 = jnp.zeros((1, N_PAD), jnp.float32).at[0, :N_OUT].set(b3)
    return (W1, B1, W2, B2, W3, B3)


def _round_up(n, m):
    return ((n + m - 1) // m) * m


@functools.partial(jax.jit, static_argnames=("tm",))
def number_classifier_forward(x, params, *, tm=1024):
    """x: [B, 10] f32; params: output of prepare_params. Returns [B, 2] f32 logits."""
    w1p, b1p, w2p, b2p, w3p, b3p = params
    B = x.shape[0]

    # Tile selection: big tiles (default 1024 rows, multiple of 16), but keep >= 2 grid
    # steps when the batch allows it so v7x's two TensorCores both get work.
    rows16 = _round_up(max(B, 1), 16)
    n_tiles = max(pl.cdiv(rows16, tm), 1)
    if n_tiles == 1 and rows16 > 16:
        n_tiles = 2
    tm_eff = _round_up(pl.cdiv(rows16, n_tiles), 16)
    b_pad = _round_up(B, tm_eff)

    # Only row-pad (single fused pad) when needed; no lane padding / bf16 copy in HBM.
    xp = x if b_pad == B else jnp.pad(x, ((0, b_pad - B), (0, 0)))

    resident = lambda shape: pl.BlockSpec(shape, lambda i: (0,) * len(shape))

    flops = 2 * b_pad * (K1 * KH + KH * KH + KH * N_PAD)
    bytes_accessed = (b_pad * F_IN * 4 + b_pad * N_PAD * 4
                      + 2 * (w1p.size + w2p.size + w3p.size)
                      + 4 * (b1p.size + b2p.size + b3p.size))

    out = pl.pallas_call(
        mlp_kernel,
        out_shape=jax.ShapeDtypeStruct((b_pad, N_PAD), jnp.float32),
        grid=(b_pad // tm_eff,),
        in_specs=[
            pl.BlockSpec((tm_eff, F_IN), lambda i: (i, 0)),  # x: pipelined batch tiles
            resident((K1, KH)),                              # W1 (VMEM-resident)
            resident((1, KH)),                               # b1
            resident((KH, KH)),                              # W2
            resident((1, KH)),                               # b2
            resident((KH, N_PAD)),                           # W3
            resident((1, N_PAD)),                            # b3
        ],
        out_specs=pl.BlockSpec((tm_eff, N_PAD), lambda i: (i, 0)),
        scratch_shapes=[pltpu.VMEM((tm_eff, K1), jnp.bfloat16)],
        compiler_params=pltpu.CompilerParams(
            dimension_semantics=("parallel",),               # megacore-shardable batch axis
            vmem_limit_bytes=32 * 1024 * 1024),
        cost_estimate=pl.CostEstimate(flops=flops, transcendentals=0,
                                      bytes_accessed=bytes_accessed),
    )(xp, w1p, b1p, w2p, b2p, w3p, b3p)

    return out[:B, :N_OUT]


def init_linear(key, fan_in, fan_out):
    """PyTorch-style uniform init: U(-1/sqrt(fan_in), 1/sqrt(fan_in)).
    Returns W transposed to [fan_in, fan_out] plus bias [fan_out]."""
    kw, kb = jax.random.split(key)
    bound = 1.0 / jnp.sqrt(fan_in)
    w = jax.random.uniform(kw, (fan_in, fan_out), jnp.float32, -bound, bound)
    b = jax.random.uniform(kb, (fan_out,), jnp.float32, -bound, bound)
    return w, b


if __name__ == "__main__":
    key = jax.random.PRNGKey(0)
    kx, k1, k2, k3 = jax.random.split(key, 4)

    B = 8
    x = jax.random.normal(kx, (B, F_IN), jnp.float32)

    w1, b1 = init_linear(k1, F_IN, H)
    w2, b2 = init_linear(k2, H, H)
    w3, b3 = init_linear(k3, H, N_OUT)

    params = prepare_params(w1, b1, w2, b2, w3, b3)

    out = number_classifier_forward(x, params)
    out = jax.block_until_ready(out)
    assert out.shape == (B, N_OUT)

    # Reference 1: bf16-emulated (matches kernel numerics: bf16 MXU inputs, f32 acc,
    # f32 bias adds) — tight tolerance.
    bf = lambda a: a.astype(jnp.bfloat16).astype(jnp.float32)
    h1 = jnp.maximum(bf(x) @ bf(w1) + b1, 0.0)
    h2 = jnp.maximum(bf(h1) @ bf(w2) + b2, 0.0)
    ref_bf16 = bf(h2) @ bf(w3) + b3
    assert jnp.allclose(out, ref_bf16, atol=1e-2, rtol=1e-2)

    # Reference 2: full f32 torch semantics — loose tolerance for the bf16 MXU path.
    h1f = jnp.maximum(x @ w1 + b1, 0.0)
    h2f = jnp.maximum(h1f @ w2 + b2, 0.0)
    ref_f32 = h2f @ w3 + b3
    assert jnp.allclose(out, ref_f32, atol=5e-2, rtol=5e-2)

    print("KERNEL_OK")
</pallas_src>

<mosaic_0001>
module attributes {stable_mosaic.version = 11 : i64} {
  func.func @mlp_kernel(%arg0: i32, %arg1: memref<16x10xf32, #tpu.memory_space<vmem>>, %arg2: memref<16x128xbf16, #tpu.memory_space<vmem>>, %arg3: memref<1x128xf32, #tpu.memory_space<vmem>>, %arg4: memref<128x128xbf16, #tpu.memory_space<vmem>>, %arg5: memref<1x128xf32, #tpu.memory_space<vmem>>, %arg6: memref<128x8xbf16, #tpu.memory_space<vmem>>, %arg7: memref<1x8xf32, #tpu.memory_space<vmem>>, %arg8: memref<16x8xf32, #tpu.memory_space<vmem>>, %arg9: memref<16x16xbf16, #tpu.memory_space<vmem>>) attributes {dimension_semantics = [#tpu.dimension_semantics<parallel>], iteration_bounds = array<i64: 1>, scalar_prefetch = 0 : i64, scratch_operands = 1 : i64, tpu.core_type = #tpu.core_type<tc>, window_params = [{transform_indices = @transform_0, window_bounds = array<i64: 16, 10>}, {pipeline_mode = #tpu.pipeline_mode<synchronous>, transform_indices = @transform_1, window_bounds = array<i64: 16, 128>}, {pipeline_mode = #tpu.pipeline_mode<synchronous>, transform_indices = @transform_2, window_bounds = array<i64: 1, 128>}, {pipeline_mode = #tpu.pipeline_mode<synchronous>, transform_indices = @transform_3, window_bounds = array<i64: 128, 128>}, {pipeline_mode = #tpu.pipeline_mode<synchronous>, transform_indices = @transform_4, window_bounds = array<i64: 1, 128>}, {pipeline_mode = #tpu.pipeline_mode<synchronous>, transform_indices = @transform_5, window_bounds = array<i64: 128, 8>}, {pipeline_mode = #tpu.pipeline_mode<synchronous>, transform_indices = @transform_6, window_bounds = array<i64: 1, 8>}, {transform_indices = @transform_7, window_bounds = array<i64: 16, 8>}]} {
    %cst = arith.constant 0.000000e+00 : bf16
    %0 = vector.broadcast %cst : bf16 to vector<16x16xbf16>
    %c0 = arith.constant 0 : index
    %c0_0 = arith.constant 0 : index
    %1 = vector.load %arg9[%c0, %c0_0] : memref<16x16xbf16, #tpu.memory_space<vmem>>, vector<16x16xbf16>
    tpu.vector_store %arg9[%c0, %c0_0], %0 {strides = array<i32>} : memref<16x16xbf16, #tpu.memory_space<vmem>>, vector<16x16xbf16>,
    %c0_1 = arith.constant 0 : index
    %c0_2 = arith.constant 0 : index
    %2 = vector.load %arg1[%c0_1, %c0_2] : memref<16x10xf32, #tpu.memory_space<vmem>>, vector<16x10xf32>
    %3 = arith.truncf %2 : vector<16x10xf32> to vector<16x10xbf16>
    %c0_3 = arith.constant 0 : index
    %c0_4 = arith.constant 0 : index
    %4 = vector.load %arg9[%c0_3, %c0_4] : memref<16x16xbf16, #tpu.memory_space<vmem>>, vector<16x10xbf16>
    tpu.vector_store %arg9[%c0_3, %c0_4], %3 {strides = array<i32>} : memref<16x16xbf16, #tpu.memory_space<vmem>>, vector<16x10xbf16>,
    %c0_5 = arith.constant 0 : index
    %c0_6 = arith.constant 0 : index
    %5 = vector.load %arg9[%c0_5, %c0_6] : memref<16x16xbf16, #tpu.memory_space<vmem>>, vector<16x16xbf16>
    %c0_7 = arith.constant 0 : index
    %c0_8 = arith.constant 0 : index
    %6 = vector.load %arg2[%c0_7, %c0_8] : memref<16x128xbf16, #tpu.memory_space<vmem>>, vector<16x128xbf16>
    %cst_9 = arith.constant dense<0.000000e+00> : vector<16x128xf32>
    %7 = tpu.matmul %5, %6, %cst_9 {dimension_numbers = #tpu.dot_dimension_numbers<[1], [0], [0], [1], [0, 0, 1, 1], [], []>} : vector<16x16xbf16>, vector<16x128xbf16>, vector<16x128xf32> -> vector<16x128xf32>
    %c0_10 = arith.constant 0 : index
    %c0_11 = arith.constant 0 : index
    %8 = vector.load %arg3[%c0_10, %c0_11] : memref<1x128xf32, #tpu.memory_space<vmem>>, vector<1x128xf32>
    %9 = vector.broadcast %8 : vector<1x128xf32> to vector<16x128xf32>
    %10 = arith.addf %7, %9 : vector<16x128xf32>
    %cst_12 = arith.constant 0.000000e+00 : f32
    %11 = vector.broadcast %cst_12 : f32 to vector<16x128xf32>
    %12 = arith.maximumf %10, %11 : vector<16x128xf32>
    %13 = arith.truncf %12 : vector<16x128xf32> to vector<16x128xbf16>
    %c0_13 = arith.constant 0 : index
    %c0_14 = arith.constant 0 : index
    %14 = vector.load %arg4[%c0_13, %c0_14] : memref<128x128xbf16, #tpu.memory_space<vmem>>, vector<128x128xbf16>
    %cst_15 = arith.constant dense<0.000000e+00> : vector<16x128xf32>
    %15 = tpu.matmul %13, %14, %cst_15 {dimension_numbers = #tpu.dot_dimension_numbers<[1], [0], [0], [1], [0, 0, 1, 1], [], []>} : vector<16x128xbf16>, vector<128x128xbf16>, vector<16x128xf32> -> vector<16x128xf32>
    %c0_16 = arith.constant 0 : index
    %c0_17 = arith.constant 0 : index
    %16 = vector.load %arg5[%c0_16, %c0_17] : memref<1x128xf32, #tpu.memory_space<vmem>>, vector<1x128xf32>
    %17 = vector.broadcast %16 : vector<1x128xf32> to vector<16x128xf32>
    %18 = arith.addf %15, %17 : vector<16x128xf32>
    %cst_18 = arith.constant 0.000000e+00 : f32
    %19 = vector.broadcast %cst_18 : f32 to vector<16x128xf32>
    %20 = arith.maximumf %18, %19 : vector<16x128xf32>
    %21 = arith.truncf %20 : vector<16x128xf32> to vector<16x128xbf16>
    %c0_19 = arith.constant 0 : index
    %c0_20 = arith.constant 0 : index
    %22 = vector.load %arg6[%c0_19, %c0_20] : memref<128x8xbf16, #tpu.memory_space<vmem>>, vector<128x8xbf16>
    %cst_21 = arith.constant dense<0.000000e+00> : vector<16x8xf32>
    %23 = tpu.matmul %21, %22, %cst_21 {dimension_numbers = #tpu.dot_dimension_numbers<[1], [0], [0], [1], [0, 0, 1, 1], [], []>} : vector<16x128xbf16>, vector<128x8xbf16>, vector<16x8xf32> -> vector<16x8xf32>
    %c0_22 = arith.constant 0 : index
    %c0_23 = arith.constant 0 : index
    %24 = vector.load %arg7[%c0_22, %c0_23] : memref<1x8xf32, #tpu.memory_space<vmem>>, vector<1x8xf32>
    %25 = vector.broadcast %24 : vector<1x8xf32> to vector<16x8xf32>
    %26 = arith.addf %23, %25 : vector<16x8xf32>
    %c0_24 = arith.constant 0 : index
    %c0_25 = arith.constant 0 : index
    %27 = vector.load %arg8[%c0_24, %c0_25] : memref<16x8xf32, #tpu.memory_space<vmem>>, vector<16x8xf32>
    tpu.vector_store %arg8[%c0_24, %c0_25], %26 {strides = array<i32>} : memref<16x8xf32, #tpu.memory_space<vmem>>, vector<16x8xf32>,
    return
  }
  func.func @transform_0(%arg0: i32) -> (i32, i32) {
    %c0_i32 = arith.constant 0 : i32
    %c0_i32_0 = arith.constant 0 : i32
    return %arg0, %c0_i32 : i32, i32
  }
  func.func @transform_1(%arg0: i32) -> (i32, i32) {
    %c0_i32 = arith.constant 0 : i32
    %c0_i32_0 = arith.constant 0 : i32
    %c0_i32_1 = arith.constant 0 : i32
    return %c0_i32, %c0_i32_0 : i32, i32
  }
  func.func @transform_2(%arg0: i32) -> (i32, i32) {
    %c0_i32 = arith.constant 0 : i32
    %c0_i32_0 = arith.constant 0 : i32
    %c0_i32_1 = arith.constant 0 : i32
    return %c0_i32, %c0_i32_0 : i32, i32
  }
  func.func @transform_3(%arg0: i32) -> (i32, i32) {
    %c0_i32 = arith.constant 0 : i32
    %c0_i32_0 = arith.constant 0 : i32
    %c0_i32_1 = arith.constant 0 : i32
    return %c0_i32, %c0_i32_0 : i32, i32
  }
  func.func @transform_4(%arg0: i32) -> (i32, i32) {
    %c0_i32 = arith.constant 0 : i32
    %c0_i32_0 = arith.constant 0 : i32
    %c0_i32_1 = arith.constant 0 : i32
    return %c0_i32, %c0_i32_0 : i32, i32
  }
  func.func @transform_5(%arg0: i32) -> (i32, i32) {
    %c0_i32 = arith.constant 0 : i32
    %c0_i32_0 = arith.constant 0 : i32
    %c0_i32_1 = arith.constant 0 : i32
    return %c0_i32, %c0_i32_0 : i32, i32
  }
  func.func @transform_6(%arg0: i32) -> (i32, i32) {
    %c0_i32 = arith.constant 0 : i32
    %c0_i32_0 = arith.constant 0 : i32
    %c0_i32_1 = arith.constant 0 : i32
    return %c0_i32, %c0_i32_0 : i32, i32
  }
  func.func @transform_7(%arg0: i32) -> (i32, i32) {
    %c0_i32 = arith.constant 0 : i32
    %c0_i32_0 = arith.constant 0 : i32
    return %arg0, %c0_i32 : i32, i32
  }
}

</mosaic_0001>

<llo_original>
// kernel: number_classifier_forward.1
$region0: #{number_classifier_forward.1}
  #allocation0 [shape = 'u32[]', space=smem, size = 0x4, offset = 0x4, fixed_abs, tag = 'smem constant byte address 0x4 - core index']
  #allocation1 [shape = 'u32[144,128]{1,0:T(1,128)}', space=vmem, size = 0x12000, scoped, tag = 'internal scratch']
  #allocation2 [shape = 'bf16[16,16]{1,0:T(8,128)(2,1)}', space=vmem, size = 0x1000, scoped, tag = 'scratch operand']
  %s0 = inlined_call_operand.vmem [shape: f32[16,10], index: 0, kind: input, shape index: {}]
  %s1 = inlined_call_operand.vmem [shape: bf16[16,128], index: 1, kind: input, shape index: {}]
  %s2 = inlined_call_operand.vmem [shape: f32[1,128], index: 2, kind: input, shape index: {}]
  %s3 = inlined_call_operand.vmem [shape: bf16[128,128], index: 3, kind: input, shape index: {}]
  %s4 = inlined_call_operand.vmem [shape: f32[1,128], index: 4, kind: input, shape index: {}]
  %s5 = inlined_call_operand.vmem [shape: bf16[128,8], index: 5, kind: input, shape index: {}]
  %s6 = inlined_call_operand.vmem [shape: f32[1,8], index: 6, kind: input, shape index: {}]
  %s7 = inlined_call_operand.vmem [shape: f32[16,8], index: 7, kind: output, shape index: {}]
  %s8 = sld [smem:[#allocation0]]
  $region38: #{number_classifier_forward.1} parent=0
    _
  %s10 = ssub.s32 1, %s8
  %s11 = scalar_select 0, %s10, %s8
  // Predicated region
  $region2: #{number_classifier_forward.1} parent=0 // pred_check
    _
  $region3: #{number_classifier_forward.1} parent=0 // pred_check_branch
    %13 = sbr.rel (0) target = $region5
  $region4: #{number_classifier_forward.1} parent=0 // pred_region
    _
  $region5: #{number_classifier_forward.1} parent=0 // pred_fallthru
    _
  // Predicated region
  $region6: #{number_classifier_forward.1} parent=0 // pred_check
    _
  $region7: #{number_classifier_forward.1} parent=0 // pred_check_branch
    %15 = sbr.rel (0) target = $region9
  $region8: #{number_classifier_forward.1} parent=0 // pred_region
    _
  $region9: #{number_classifier_forward.1} parent=0 // pred_fallthru
    _
  // Predicated region
  $region10: #{number_classifier_forward.1} parent=0 // pred_check
    _
  $region11: #{number_classifier_forward.1} parent=0 // pred_check_branch
    %17 = sbr.rel (0) target = $region13
  $region12: #{number_classifier_forward.1} parent=0 // pred_region
    _
  $region13: #{number_classifier_forward.1} parent=0 // pred_fallthru
    _
  // Predicated region
  $region14: #{number_classifier_forward.1} parent=0 // pred_check
    _
  $region15: #{number_classifier_forward.1} parent=0 // pred_check_branch
    %19 = sbr.rel (0) target = $region17
  $region16: #{number_classifier_forward.1} parent=0 // pred_region
    _
  $region17: #{number_classifier_forward.1} parent=0 // pred_fallthru
    _
  // Predicated region
  $region18: #{number_classifier_forward.1} parent=0 // pred_check
    _
  $region19: #{number_classifier_forward.1} parent=0 // pred_check_branch
    %21 = sbr.rel (0) target = $region21
  $region20: #{number_classifier_forward.1} parent=0 // pred_region
    _
  $region21: #{number_classifier_forward.1} parent=0 // pred_fallthru
    _
  // Predicated region
  $region22: #{number_classifier_forward.1} parent=0 // pred_check
    _
  $region23: #{number_classifier_forward.1} parent=0 // pred_check_branch
    %23 = sbr.rel (0) target = $region25
  $region24: #{number_classifier_forward.1} parent=0 // pred_region
    _
  $region25: #{number_classifier_forward.1} parent=0 // pred_fallthru
    _
  // Predicated region
  $region26: #{number_classifier_forward.1} parent=0 // pred_check
    _
  $region27: #{number_classifier_forward.1} parent=0 // pred_check_branch
    %25 = sbr.rel (0) target = $region29
  $region28: #{number_classifier_forward.1} parent=0 // pred_region
    _
  $region29: #{number_classifier_forward.1} parent=0 // pred_fallthru
    _
  %vm27 = vcmask 125952
  %28 = vst.msk [vmem:[#allocation2] sm:$0xf] %vm27, 0
  %29 = vst.msk [vmem:[#allocation2 + $0x4] sm:$0xf] %vm27, 0
  %v30 = vld [vmem:[%s0] sm:$0xff]
  %v31 = vld [vmem:[%s0 + $0x8] sm:$0xff]
  %v32 = vpack.c.bf16 %v31, %v30
  %v34 = vunpack.c.l.b16 %v32
  %v35 = vunpack.c.h.b16 %v32
  %v36 = vpack.c.b16 %v34, %v34
  %v37 = vpack.c.b16 %v35, %v35
  %vm40 = vcmask 76800
  %41 = vst.msk [vmem:[#allocation2] sm:$0xf] %vm40, %v36
  %42 = vst.msk [vmem:[#allocation2 + $0x4] sm:$0xf] %vm40, %v37
  %v43 = vld [vmem:[#allocation2] sm:$0xf]
  %v44 = vld [vmem:[#allocation2 + $0x4] sm:$0xf]
  %v45 = vld [vmem:[%s1] sm:$0xf]
  %v46 = vld [vmem:[%s1 + $0x4] sm:$0xf]
  %v47 = vld [vmem:[%s2] sm:$0x1]
  %v49 = vlaneseq
  %v50 = vshrl.u32 %v49, 7
  %v51 = vsub.s32 0, %v50
  %v52 = vrot.slane %v47, %v51
  %v56 = vunpack.c.l.b16 %v43
  %v57 = vunpack.c.l.b16 %v44
  %v58 = vpack.c.b16 %v57, %v56
  %v61 = vunpack.c.l.b16 %v45
  %v62 = vunpack.c.l.b16 %v46
  %v63 = vpack.c.b16 %v62, %v61
  %vm65 = vcmask 130048
  %v67 = vsel %vm65, %v58, 0
  %69 = vmatprep.subr.bf16.mxu0 0
  %70 = vmatpush1.bf16.msra.mxu0 0
  %71 = vmatprep.subr.bf16.mxu0 0
  %72 = vmatpush1.bf16.msra.mxu0 0
  %73 = vmatprep.subr.bf16.mxu0 0
  %74 = vmatpush1.bf16.msra.mxu0 0
  %75 = vmatprep.subr.bf16.mxu0 0
  %76 = vmatpush1.bf16.msra.mxu0 0
  %77 = vmatprep.subr.bf16.mxu0 0
  %78 = vmatpush1.bf16.msra.mxu0 0
  %79 = vmatprep.subr.bf16.mxu0 0
  %80 = vmatpush1.bf16.msra.mxu0 0
  %81 = vmatprep.subr.bf16.mxu0 0
  %82 = vmatpush1.bf16.msra.mxu0 0
  %83 = vmatprep.subr.bf16.mxu0 0
  %84 = vmatpush1.bf16.msra.mxu0 %v63
  %85 = vmatprep.subr.bf16.mxu0 0
  %86 = vmatpush2.bf16.msra.mxu0 0
  %87 = vmatprep.subr.bf16.mxu0 0
  %88 = vmatpush2.bf16.msra.mxu0 0
  %89 = vmatprep.subr.bf16.mxu0 0
  %90 = vmatpush2.bf16.msra.mxu0 0
  %91 = vmatprep.subr.bf16.mxu0 0
  %92 = vmatpush2.bf16.msra.mxu0 0
  %93 = vmatprep.subr.bf16.mxu0 0
  %94 = vmatpush2.bf16.msra.mxu0 0
  %95 = vmatprep.subr.bf16.mxu0 0
  %96 = vmatpush2.bf16.msra.mxu0 0
  %97 = vmatprep.subr.bf16.mxu0 0
  %98 = vmatpush2.bf16.msra.mxu0 0
  %99 = vmatprep.subr.bf16.mxu0 0
  %100 = vmatpush2.bf16.msra.mxu0 0
  %101 = vmatprep.mubr.bf16.mxu0 0
  %102 = vmatmul.mubr.bf16.gmra.mxu0 %v67
  %v103 = vpop.f32.mrf.mxu0
  %v104 = vadd.f32 %v52, %v103
  %v105 = vpop.f32.mrf.mxu0
  %v106 = vpop.f32.mrf.mxu0
  %v107 = vadd.f32 %v52, %v106
  %v108 = vpop.f32.mrf.mxu0
  %109 = vdwg.mxu0
  %v110 = vmax.f32 %v104, 0.0
  %v111 = vmax.f32 %v107, 0.0
  %v112 = vpack.c.bf16 %v111, %v110
  %v113 = vld [vmem:[%s3] sm:$0xf]
  %v114 = vld [vmem:[%s3 + $0x4] sm:$0xf]
  %v115 = vld [vmem:[%s3 + $0x8] sm:$0xf]
  %v116 = vld [vmem:[%s3 + $0xc] sm:$0xf]
  %v117 = vld [vmem:[%s3 + $0x10] sm:$0xf]
  %v118 = vld [vmem:[%s3 + $0x14] sm:$0xf]
  %v119 = vld [vmem:[%s3 + $0x18] sm:$0xf]
  %v120 = vld [vmem:[%s3 + $0x1c] sm:$0xf]
  %v121 = vld [vmem:[%s3 + $0x20] sm:$0xf]
  %v122 = vld [vmem:[%s3 + $0x24] sm:$0xf]
  %v123 = vld [vmem:[%s3 + $0x28] sm:$0xf]
  %v124 = vld [vmem:[%s3 + $0x2c] sm:$0xf]
  %v125 = vld [vmem:[%s3 + $0x30] sm:$0xf]
  %v126 = vld [vmem:[%s3 + $0x34] sm:$0xf]
  %v127 = vld [vmem:[%s3 + $0x38] sm:$0xf]
  %v128 = vld [vmem:[%s3 + $0x3c] sm:$0xf]
  %v129 = vld [vmem:[%s4] sm:$0x1]
  %v131 = vlaneseq
  %v132 = vshrl.u32 %v131, 7
  %v133 = vsub.s32 0, %v132
  %v134 = vrot.slane %v129, %v133
  %v152 = vunpack.c.l.b16 %v113
  %v153 = vunpack.c.l.b16 %v114
  %v154 = vunpack.c.l.b16 %v115
  %v155 = vunpack.c.l.b16 %v116
  %v156 = vunpack.c.l.b16 %v117
  %v157 = vunpack.c.l.b16 %v118
  %v158 = vunpack.c.l.b16 %v119
  %v159 = vunpack.c.l.b16 %v120
  %v160 = vunpack.c.l.b16 %v121
  %v161 = vunpack.c.l.b16 %v122
  %v162 = vunpack.c.l.b16 %v123
  %v163 = vunpack.c.l.b16 %v124
  %v164 = vunpack.c.l.b16 %v125
  %v165 = vunpack.c.l.b16 %v126
  %v166 = vunpack.c.l.b16 %v127
  %v167 = vunpack.c.l.b16 %v128
  %v168 = vpack.c.b16 %v153, %v152
  %v169 = vpack.c.b16 %v155, %v154
  %v170 = vpack.c.b16 %v157, %v156
  %v171 = vpack.c.b16 %v159, %v158
  %v172 = vpack.c.b16 %v161, %v160
  %v173 = vpack.c.b16 %v163, %v162
  %v174 = vpack.c.b16 %v165, %v164
  %v175 = vpack.c.b16 %v167, %v166
  %184 = vmatprep.subr.bf16.mxu0 0
  %185 = vmatpush1.bf16.msra.mxu0 %v175
  %186 = vmatprep.subr.bf16.mxu0 0
  %187 = vmatpush1.bf16.msra.mxu0 %v174
  %188 = vmatprep.subr.bf16.mxu0 0
  %189 = vmatpush1.bf16.msra.mxu0 %v173
  %190 = vmatprep.subr.bf16.mxu0 0
  %191 = vmatpush1.bf16.msra.mxu0 %v172
  %192 = vmatprep.subr.bf16.mxu0 0
  %193 = vmatpush1.bf16.msra.mxu0 %v171
  %194 = vmatprep.subr.bf16.mxu0 0
  %195 = vmatpush1.bf16.msra.mxu0 %v170
  %196 = vmatprep.subr.bf16.mxu0 0
  %197 = vmatpush1.bf16.msra.mxu0 %v169
  %198 = vmatprep.subr.bf16.mxu0 0
  %199 = vmatpush1.bf16.msra.mxu0 %v168
  %200 = vmatprep.subr.bf16.mxu0 0
  %201 = vmatpush2.bf16.msra.mxu0 0
  %202 = vmatprep.subr.bf16.mxu0 0
  %203 = vmatpush2.bf16.msra.mxu0 0
  %204 = vmatprep.subr.bf16.mxu0 0
  %205 = vmatpush2.bf16.msra.mxu0 0
  %206 = vmatprep.subr.bf16.mxu0 0
  %207 = vmatpush2.bf16.msra.mxu0 0
  %208 = vmatprep.subr.bf16.mxu0 0
  %209 = vmatpush2.bf16.msra.mxu0 0
  %210 = vmatprep.subr.bf16.mxu0 0
  %211 = vmatpush2.bf16.msra.mxu0 0
  %212 = vmatprep.subr.bf16.mxu0 0
  %213 = vmatpush2.bf16.msra.mxu0 0
  %214 = vmatprep.subr.bf16.mxu0 0
  %215 = vmatpush2.bf16.msra.mxu0 0
  %216 = vmatprep.mubr.bf16.mxu0 0
  %217 = vmatmul.mubr.bf16.gmra.mxu0 %v112
  %v218 = vpop.f32.mrf.mxu0
  %v219 = vadd.f32 %v134, %v218
  %v220 = vpop.f32.mrf.mxu0
  %v221 = vpop.f32.mrf.mxu0
  %v222 = vadd.f32 %v134, %v221
  %v223 = vpop.f32.mrf.mxu0
  %224 = vdwg.mxu0
  %v225 = vmax.f32 %v219, 0.0
  %v226 = vmax.f32 %v222, 0.0
  %v227 = vpack.c.bf16 %v226, %v225
  %v228 = vld [vmem:[%s5] sm:$0xf]
  %v229 = vld [vmem:[%s5 + $0x4] sm:$0xf]
  %v230 = vld [vmem:[%s5 + $0x8] sm:$0xf]
  %v231 = vld [vmem:[%s5 + $0xc] sm:$0xf]
  %v232 = vld [vmem:[%s5 + $0x10] sm:$0xf]
  %v233 = vld [vmem:[%s5 + $0x14] sm:$0xf]
  %v234 = vld [vmem:[%s5 + $0x18] sm:$0xf]
  %v235 = vld [vmem:[%s5 + $0x1c] sm:$0xf]
  %v236 = vld [vmem:[%s5 + $0x20] sm:$0xf]
  %v237 = vld [vmem:[%s5 + $0x24] sm:$0xf]
  %v238 = vld [vmem:[%s5 + $0x28] sm:$0xf]
  %v239 = vld [vmem:[%s5 + $0x2c] sm:$0xf]
  %v240 = vld [vmem:[%s5 + $0x30] sm:$0xf]
  %v241 = vld [vmem:[%s5 + $0x34] sm:$0xf]
  %v242 = vld [vmem:[%s5 + $0x38] sm:$0xf]
  %v243 = vld [vmem:[%s5 + $0x3c] sm:$0xf]
  %v244 = vld [vmem:[%s6] sm:$0x1]
  %v246 = vlaneseq
  %v247 = vshrl.u32 %v246, 7
  %v248 = vsub.s32 0, %v247
  %v249 = vrot.slane %v244, %v248
  %v267 = vunpack.c.l.b16 %v228
  %v268 = vunpack.c.l.b16 %v229
  %v269 = vunpack.c.l.b16 %v230
  %v270 = vunpack.c.l.b16 %v231
  %v271 = vunpack.c.l.b16 %v232
  %v272 = vunpack.c.l.b16 %v233
  %v273 = vunpack.c.l.b16 %v234
  %v274 = vunpack.c.l.b16 %v235
  %v275 = vunpack.c.l.b16 %v236
  %v276 = vunpack.c.l.b16 %v237
  %v277 = vunpack.c.l.b16 %v238
  %v278 = vunpack.c.l.b16 %v239
  %v279 = vunpack.c.l.b16 %v240
  %v280 = vunpack.c.l.b16 %v241
  %v281 = vunpack.c.l.b16 %v242
  %v282 = vunpack.c.l.b16 %v243
  %v283 = vpack.c.b16 %v268, %v267
  %v284 = vpack.c.b16 %v270, %v269
  %v285 = vpack.c.b16 %v272, %v271
  %v286 = vpack.c.b16 %v274, %v273
  %v287 = vpack.c.b16 %v276, %v275
  %v288 = vpack.c.b16 %v278, %v277
  %v289 = vpack.c.b16 %v280, %v279
  %v290 = vpack.c.b16 %v282, %v281
  %299 = vmatprep.subr.bf16.mxu0 0
  %300 = vmatpush1.bf16.msra.mxu0 %v290
  %301 = vmatprep.subr.bf16.mxu0 0
  %302 = vmatpush1.bf16.msra.mxu0 %v289
  %303 = vmatprep.subr.bf16.mxu0 0
  %304 = vmatpush1.bf16.msra.mxu0 %v288
  %305 = vmatprep.subr.bf16.mxu0 0
  %306 = vmatpush1.bf16.msra.mxu0 %v287
  %307 = vmatprep.subr.bf16.mxu0 0
  %308 = vmatpush1.bf16.msra.mxu0 %v286
  %309 = vmatprep.subr.bf16.mxu0 0
  %310 = vmatpush1.bf16.msra.mxu0 %v285
  %311 = vmatprep.subr.bf16.mxu0 0
  %312 = vmatpush1.bf16.msra.mxu0 %v284
  %313 = vmatprep.subr.bf16.mxu0 0
  %314 = vmatpush1.bf16.msra.mxu0 %v283
  %315 = vmatprep.subr.bf16.mxu0 0
  %316 = vmatpush2.bf16.msra.mxu0 0
  %317 = vmatprep.subr.bf16.mxu0 0
  %318 = vmatpush2.bf16.msra.mxu0 0
  %319 = vmatprep.subr.bf16.mxu0 0
  %320 = vmatpush2.bf16.msra.mxu0 0
  %321 = vmatprep.subr.bf16.mxu0 0
  %322 = vmatpush2.bf16.msra.mxu0 0
  %323 = vmatprep.subr.bf16.mxu0 0
  %324 = vmatpush2.bf16.msra.mxu0 0
  %325 = vmatprep.subr.bf16.mxu0 0
  %326 = vmatpush2.bf16.msra.mxu0 0
  %327 = vmatprep.subr.bf16.mxu0 0
  %328 = vmatpush2.bf16.msra.mxu0 0
  %329 = vmatprep.subr.bf16.mxu0 0
  %330 = vmatpush2.bf16.msra.mxu0 0
  %331 = vmatprep.mubr.bf16.mxu0 0
  %332 = vmatmul.mubr.bf16.gmra.mxu0 %v227
  %v333 = vpop.f32.mrf.mxu0
  %v334 = vadd.f32 %v249, %v333
  %v335 = vpop.f32.mrf.mxu0
  %v336 = vpop.f32.mrf.mxu0
  %v337 = vadd.f32 %v249, %v336
  %v338 = vpop.f32.mrf.mxu0
  %339 = vdwg.mxu0
  %vm340 = vcmask 64512
  %341 = vst.msk [vmem:[%s7] sm:$0xff] %vm340, %v334
  %342 = vst.msk [vmem:[%s7 + $0x8] sm:$0xff] %vm340, %v337
  // Predicated region
  $region30: #{number_classifier_forward.1} parent=0 // pred_check
    _
  $region31: #{number_classifier_forward.1} parent=0 // pred_check_branch
    %344 = sbr.rel (0) target = $region33
  $region32: #{number_classifier_forward.1} parent=0 // pred_region
    _
  $region33: #{number_classifier_forward.1} parent=0 // pred_fallthru
    _
  // Predicated region
  $region34: #{number_classifier_forward.1} parent=0 // pred_check
    _
  $region35: #{number_classifier_forward.1} parent=0 // pred_check_branch
    %346 = sbr.rel (0) target = $region37
  $region36: #{number_classifier_forward.1} parent=0 // pred_region
    _
  $region37: #{number_classifier_forward.1} parent=0 // pred_fallthru
    _

</llo_original>
